<compile_context>
chip_gen: v7x
topology: tpu7x:2x2x1
jax: 0.10.0
libtpu: 0.0.40
codegen_flags: <defaults>
</compile_context>

<pallas_src>
import functools

import jax
import jax.numpy as jnp
from jax.experimental import pallas as pl
from jax.experimental.pallas import tpu as pltpu


def _attention_kernel(z_ref, w1_ref, b1_ref, w2_ref, out_ref, beta_ref, *, m_real):
    """One grid step processes BB (padded) batch elements.

    z_ref   : (BB, Mp, D)  input block (any float dtype; upcast to f32)
    w1_ref  : (D, H)       Linear(in->hidden) weight (transposed)
    b1_ref  : (1, H)       Linear(in->hidden) bias as a row
    w2_ref  : (1, H)       Linear(hidden->1, bias=False) weight as a row
    out_ref : (BB, D)      (beta * z).sum(dim=1)
    beta_ref: (BB, Mp)     attention weights, M on lanes
    """
    BB, M, D = z_ref.shape

    # Upcast once: the MXU takes bf16 natively but v5e's VPU/EUP do not, and
    # all softmax / accumulation math should be f32 regardless of HBM dtype.
    z = z_ref[...].astype(jnp.float32)

    # ---- Linear(D->H) + tanh over all BB*M rows at once ---------------------
    # Flattening (BB, M) onto the matmul row dim fills the MXU sublanes; with
    # BB % 8 == 0 and M % 8 == 0 the reshapes are relayout-free.
    zf = z.reshape(BB * M, D)
    h = jnp.tanh(
        jnp.dot(zf, w1_ref[...], preferred_element_type=jnp.float32)
        + b1_ref[...]
    )                                                   # (BB*M, H) f32
    h3 = h.reshape(BB, M, -1)                           # (BB, M, H)

    # ---- Linear(H->1, no bias): VPU multiply + lane (XLU) reduce -------------
    # (avoids an N=1 MXU matmul that would use 1 of 128/256 output columns)
    logits = jnp.sum(h3 * w2_ref[...], axis=-1)         # (BB, M)

    # Mask padded M positions (only traced when the wrapper padded M).
    if m_real != M:
        col = jax.lax.broadcasted_iota(jnp.int32, (BB, M), 1)
        logits = jnp.where(col < m_real, logits, -jnp.inf)

    # ---- softmax over M (lane axis: XLU reduces, EUP exp) --------------------
    mmax = jnp.max(logits, axis=-1, keepdims=True)       # (BB, 1)
    e = jnp.exp(logits - mmax)                           # (BB, M)
    denom = jnp.sum(e, axis=-1, keepdims=True)           # (BB, 1)
    # Exact reciprocal: only BB divisions per step vs BB*M*H tanh EUP ops, so
    # the approx EUP vrcp buys nothing and exact normalization (sum(beta)==1)
    # is preserved for downstream use.
    beta = e / denom                                      # (BB, M)

    beta_ref[...] = beta

    # ---- weighted sum over M: VPU broadcast-multiply + XLU sublane reduce ----
    # Preferred over einsum('bqm,bmd->bqd'), which lowers to BB one-row MXU
    # matmuls serializing on the result FIFO on v5e/v6e.
    out_ref[...] = jnp.sum(beta[:, :, None] * z, axis=1)  # (BB, D)


def _vmem_capacity_bytes() -> int:
    """Physical VMEM per TensorCore (64 MiB on v7x, 128 MiB on v5e/v6e)."""
    try:
        return int(getattr(pltpu.get_tpu_info(), "vmem_capacity_bytes",
                           64 * 1024 * 1024))
    except Exception:
        return 64 * 1024 * 1024  # conservative: assume the smallest (v7x)


def _choose_blocking(B, M_pad, D, H, z_itemsize):
    """Pick batches-per-grid-step BB, padded batch count, grid length, footprint.

    Rules (from the perf review):
      * The kernel is HBM-bound (arithmetic intensity ~H/2 flops/byte), so the
        z block should be several MiB, not "a few rows", to amortize the
        ~0.35 us per-step cost and small-DMA inefficiency.
      * Stay inside a generation-specific VMEM budget counting double-buffered
        z/out/beta blocks, double-buffered weights, and f32 temporaries.
      * BB is a multiple of 8 so (BB, ...) blocks and in-kernel reshapes stay
        layout-legal / relayout-free.
      * Keep grid length >= 2 whenever B >= 2 so both v7x TensorCores get work.
      * Non-divisible B is padded, never collapsed into one giant block.
    """
    f32 = 4
    vmem_cap = _vmem_capacity_bytes()
    # ~70% of capacity, capped: ~44 MiB budget on v7x, ~90 MiB on v5e/v6e.
    budget = min(int(vmem_cap * 0.7), 96 * 1024 * 1024)

    weight_bytes = 2 * f32 * (D * H + 2 * H)  # double-buffered weights/bias

    def vmem_footprint(bb):
        z_blk = bb * M_pad * D * z_itemsize
        out_blk = bb * D * f32
        beta_blk = bb * M_pad * f32
        temps = bb * M_pad * (D + H + 1) * f32   # f32 z copy + h + logits
        return 2 * (z_blk + out_blk + beta_blk) + weight_bytes + temps

    # Start from a ~8 MiB z block (16 MiB double-buffered) and shrink to fit.
    target_z_block = 8 * 1024 * 1024
    bb = max(8, (target_z_block // max(1, M_pad * D * z_itemsize)) // 8 * 8)
    while bb > 8 and vmem_footprint(bb) > budget:
        bb -= 8
    # No point making blocks larger than the (8-rounded) batch itself.
    bb = min(bb, max(8, -(-B // 8) * 8))

    b_pad = -(-B // bb) * bb
    nb = b_pad // bb
    if B >= 2:
        # Guarantee >= 2 grid steps so dimension_semantics=("parallel",) has
        # something to shard across v7x's two TensorCores.
        while nb < 2 and bb > 8:
            bb -= 8
            b_pad = -(-B // bb) * bb
            nb = b_pad // bb
        if nb < 2:
            b_pad, nb = 2 * bb, 2
    return bb, b_pad, nb, vmem_footprint(bb)


def attention_forward(z, w1, b1, w2):
    """z: (B, M, D). Returns (out (B, D) f32, beta (B, M, 1) f32).

    For large, HBM-bandwidth-bound problems, pass z as bfloat16: the kernel
    upcasts to f32 internally, so halving the z bytes is safe on v5e/v6e/v7x.
    """
    B, M, D = z.shape
    H = w1.shape[1]

    # Keep M a multiple of 8 so the in-kernel reshapes are relayout-free.
    M_pad = -(-M // 8) * 8
    BB, B_pad, nb, footprint = _choose_blocking(B, M_pad, D, H, z.dtype.itemsize)

    if (B_pad, M_pad) != (B, M):
        z_p = jnp.pad(z, ((0, B_pad - B), (0, M_pad - M), (0, 0)))
    else:
        z_p = z

    w1_f = w1.astype(jnp.float32)
    b1_row = b1.reshape(1, H).astype(jnp.float32)
    w2_row = w2.reshape(1, H).astype(jnp.float32)   # (H, 1) -> (1, H) row

    # Explicit scoped-VMEM limit derived from the block footprint (defaults
    # are only 16 MiB on v5e / 32 MiB on v6e & v7x), clamped to physical VMEM.
    vmem_cap = _vmem_capacity_bytes()
    vmem_limit = int(min(vmem_cap, max(32 * 1024 * 1024, footprint + (4 << 20))))

    # Advisory cost estimate so XLA schedules the custom call sensibly.
    flops = (2 * B_pad * M_pad * D * H        # Linear(D->H)
             + 3 * B_pad * M_pad * H          # Linear(H->1): mul + reduce
             + 2 * B_pad * M_pad * D          # weighted sum over M
             + 5 * B_pad * M_pad)             # softmax elementwise
    transcendentals = B_pad * M_pad * H + B_pad * M_pad + B_pad
    bytes_accessed = (z_p.dtype.itemsize * B_pad * M_pad * D
                      + 4 * (D * H + 2 * H)
                      + 4 * (B_pad * D + B_pad * M_pad))

    out_p, beta_p = pl.pallas_call(
        functools.partial(_attention_kernel, m_real=M),
        out_shape=(
            jax.ShapeDtypeStruct((B_pad, D), jnp.float32),
            jax.ShapeDtypeStruct((B_pad, M_pad), jnp.float32),
        ),
        grid_spec=pltpu.PrefetchScalarGridSpec(
            num_scalar_prefetch=0,
            grid=(nb,),
            in_specs=[
                pl.BlockSpec((BB, M_pad, D), lambda bi: (bi, 0, 0)),
                # Constant index_map: the same weight tile is reused each step.
                pl.BlockSpec((D, H), lambda bi: (0, 0)),
                pl.BlockSpec((1, H), lambda bi: (0, 0)),
                pl.BlockSpec((1, H), lambda bi: (0, 0)),
            ],
            out_specs=[
                pl.BlockSpec((BB, D), lambda bi: (bi, 0)),
                pl.BlockSpec((BB, M_pad), lambda bi: (bi, 0)),
            ],
        ),
        compiler_params=pltpu.CompilerParams(
            dimension_semantics=("parallel",),
            vmem_limit_bytes=vmem_limit,
        ),
        cost_estimate=pl.CostEstimate(
            flops=flops,
            transcendentals=transcendentals,
            bytes_accessed=bytes_accessed,
        ),
    )(z_p, w1_f, b1_row, w2_row)

    # Slice away batch/M padding and restore the PyTorch-shaped outputs.
    out = out_p[:B]
    beta = beta_p[:B, :M, None]
    return out, beta


def _reference(z, w1, b1, w2):
    # Plain-JAX reference mirroring the PyTorch forward exactly.
    h = jnp.tanh(jnp.einsum("bmd,dh->bmh", z, w1) + b1)      # (B, M, H)
    w = jnp.einsum("bmh,ho->bmo", h, w2)                      # (B, M, 1)
    beta = jax.nn.softmax(w, axis=1)                          # softmax over dim=1
    out = jnp.sum(beta * z, axis=1)                           # (B, D)
    return out, beta


if __name__ == "__main__":
    # Shapes: batch B=2, M=8 "views"/tokens, in_size=16, hidden=32
    B, M, D, H = 2, 8, 16, 32

    key = jax.random.PRNGKey(0)
    kz, k1, kb, k2 = jax.random.split(key, 4)

    z = jax.random.normal(kz, (B, M, D), dtype=jnp.float32)

    # Deterministic init mimicking nn.Linear's U(-1/sqrt(fan_in), 1/sqrt(fan_in)).
    bound1 = 1.0 / (D ** 0.5)
    w1 = jax.random.uniform(k1, (D, H), jnp.float32, -bound1, bound1)   # Linear(in,hid).weight.T
    b1 = jax.random.uniform(kb, (H,), jnp.float32, -bound1, bound1)     # Linear(in,hid).bias
    bound2 = 1.0 / (H ** 0.5)
    w2 = jax.random.uniform(k2, (H, 1), jnp.float32, -bound2, bound2)   # Linear(hid,1,bias=False).weight.T

    out, beta = attention_forward(z, w1, b1, w2)
    out = jax.block_until_ready(out)
    beta = jax.block_until_ready(beta)

    out_ref, beta_ref = _reference(z, w1, b1, w2)
    assert out.shape == (B, D) and beta.shape == (B, M, 1)
    assert jnp.allclose(out, out_ref, atol=1e-5, rtol=1e-5)
    assert jnp.allclose(beta, beta_ref, atol=1e-5, rtol=1e-5)

    print("KERNEL_OK")
</pallas_src>

<mosaic_0001>
module attributes {stable_mosaic.version = 11 : i64} {
  func.func @_attention_kernel(%arg0: i32, %arg1: memref<8x8x16xf32, #tpu.memory_space<vmem>>, %arg2: memref<16x32xf32, #tpu.memory_space<vmem>>, %arg3: memref<1x32xf32, #tpu.memory_space<vmem>>, %arg4: memref<1x32xf32, #tpu.memory_space<vmem>>, %arg5: memref<8x16xf32, #tpu.memory_space<vmem>>, %arg6: memref<8x8xf32, #tpu.memory_space<vmem>>) attributes {dimension_semantics = [#tpu.dimension_semantics<parallel>], iteration_bounds = array<i64: 2>, scalar_prefetch = 0 : i64, scratch_operands = 0 : i64, tpu.core_type = #tpu.core_type<tc>, window_params = [{transform_indices = @transform_0, window_bounds = array<i64: 8, 8, 16>}, {pipeline_mode = #tpu.pipeline_mode<synchronous>, transform_indices = @transform_1, window_bounds = array<i64: 16, 32>}, {pipeline_mode = #tpu.pipeline_mode<synchronous>, transform_indices = @transform_2, window_bounds = array<i64: 1, 32>}, {pipeline_mode = #tpu.pipeline_mode<synchronous>, transform_indices = @transform_3, window_bounds = array<i64: 1, 32>}, {transform_indices = @transform_4, window_bounds = array<i64: 8, 16>}, {transform_indices = @transform_5, window_bounds = array<i64: 8, 8>}]} {
    %c0 = arith.constant 0 : index
    %c0_0 = arith.constant 0 : index
    %c0_1 = arith.constant 0 : index
    %0 = vector.load %arg1[%c0, %c0_0, %c0_1] : memref<8x8x16xf32, #tpu.memory_space<vmem>>, vector<8x8x16xf32>
    %1 = vector.shape_cast %0 : vector<8x8x16xf32> to vector<64x16xf32>
    %c0_2 = arith.constant 0 : index
    %c0_3 = arith.constant 0 : index
    %2 = vector.load %arg2[%c0_2, %c0_3] : memref<16x32xf32, #tpu.memory_space<vmem>>, vector<16x32xf32>
    %cst = arith.constant dense<0.000000e+00> : vector<64x32xf32>
    %3 = tpu.matmul %1, %2, %cst {dimension_numbers = #tpu.dot_dimension_numbers<[1], [0], [0], [1], [0, 0, 1, 1], [], []>} : vector<64x16xf32>, vector<16x32xf32>, vector<64x32xf32> -> vector<64x32xf32>
    %c0_4 = arith.constant 0 : index
    %c0_5 = arith.constant 0 : index
    %4 = vector.load %arg3[%c0_4, %c0_5] : memref<1x32xf32, #tpu.memory_space<vmem>>, vector<1x32xf32>
    %5 = vector.broadcast %4 : vector<1x32xf32> to vector<64x32xf32>
    %6 = arith.addf %3, %5 : vector<64x32xf32>
    %7 = math.tanh %6 : vector<64x32xf32>
    %8 = vector.shape_cast %7 : vector<64x32xf32> to vector<8x8x32xf32>
    %c0_6 = arith.constant 0 : index
    %c0_7 = arith.constant 0 : index
    %9 = vector.load %arg4[%c0_6, %c0_7] : memref<1x32xf32, #tpu.memory_space<vmem>>, vector<1x32xf32>
    %10 = vector.shape_cast %9 : vector<1x32xf32> to vector<1x1x32xf32>
    %11 = vector.broadcast %10 : vector<1x1x32xf32> to vector<8x8x32xf32>
    %12 = arith.mulf %8, %11 : vector<8x8x32xf32>
    %cst_8 = arith.constant dense<0.000000e+00> : vector<8x8xf32>
    %13 = vector.multi_reduction <add>, %12, %cst_8 [2] : vector<8x8x32xf32> to vector<8x8xf32>
    %cst_9 = arith.constant dense<0xFF800000> : vector<8xf32>
    %14 = vector.multi_reduction <maximumf>, %13, %cst_9 [1] : vector<8x8xf32> to vector<8xf32>
    %15 = vector.shape_cast %14 : vector<8xf32> to vector<8x1xf32>
    %16 = vector.broadcast %15 : vector<8x1xf32> to vector<8x8xf32>
    %17 = arith.subf %13, %16 : vector<8x8xf32>
    %18 = math.exp %17 : vector<8x8xf32>
    %cst_10 = arith.constant dense<0.000000e+00> : vector<8xf32>
    %19 = vector.multi_reduction <add>, %18, %cst_10 [1] : vector<8x8xf32> to vector<8xf32>
    %20 = vector.shape_cast %19 : vector<8xf32> to vector<8x1xf32>
    %21 = vector.broadcast %20 : vector<8x1xf32> to vector<8x8xf32>
    %22 = arith.divf %18, %21 : vector<8x8xf32>
    %c0_11 = arith.constant 0 : index
    %c0_12 = arith.constant 0 : index
    %23 = vector.load %arg6[%c0_11, %c0_12] : memref<8x8xf32, #tpu.memory_space<vmem>>, vector<8x8xf32>
    tpu.vector_store %arg6[%c0_11, %c0_12], %22 {strides = array<i32>} : memref<8x8xf32, #tpu.memory_space<vmem>>, vector<8x8xf32>,
    %24 = vector.shape_cast %22 : vector<8x8xf32> to vector<8x8x1xf32>
    %25 = vector.broadcast %24 : vector<8x8x1xf32> to vector<8x8x16xf32>
    %26 = arith.mulf %25, %0 : vector<8x8x16xf32>
    %cst_13 = arith.constant dense<0.000000e+00> : vector<8x16xf32>
    %27 = vector.multi_reduction <add>, %26, %cst_13 [1] : vector<8x8x16xf32> to vector<8x16xf32>
    %c0_14 = arith.constant 0 : index
    %c0_15 = arith.constant 0 : index
    %28 = vector.load %arg5[%c0_14, %c0_15] : memref<8x16xf32, #tpu.memory_space<vmem>>, vector<8x16xf32>
    tpu.vector_store %arg5[%c0_14, %c0_15], %27 {strides = array<i32>} : memref<8x16xf32, #tpu.memory_space<vmem>>, vector<8x16xf32>,
    return
  }
  func.func @transform_0(%arg0: i32) -> (i32, i32, i32) {
    %c0_i32 = arith.constant 0 : i32
    %c0_i32_0 = arith.constant 0 : i32
    %c0_i32_1 = arith.constant 0 : i32
    return %arg0, %c0_i32, %c0_i32_0 : i32, i32, i32
  }
  func.func @transform_1(%arg0: i32) -> (i32, i32) {
    %c0_i32 = arith.constant 0 : i32
    %c0_i32_0 = arith.constant 0 : i32
    %c0_i32_1 = arith.constant 0 : i32
    return %c0_i32, %c0_i32_0 : i32, i32
  }
  func.func @transform_2(%arg0: i32) -> (i32, i32) {
    %c0_i32 = arith.constant 0 : i32
    %c0_i32_0 = arith.constant 0 : i32
    %c0_i32_1 = arith.constant 0 : i32
    return %c0_i32, %c0_i32_0 : i32, i32
  }
  func.func @transform_3(%arg0: i32) -> (i32, i32) {
    %c0_i32 = arith.constant 0 : i32
    %c0_i32_0 = arith.constant 0 : i32
    %c0_i32_1 = arith.constant 0 : i32
    return %c0_i32, %c0_i32_0 : i32, i32
  }
  func.func @transform_4(%arg0: i32) -> (i32, i32) {
    %c0_i32 = arith.constant 0 : i32
    %c0_i32_0 = arith.constant 0 : i32
    return %arg0, %c0_i32 : i32, i32
  }
  func.func @transform_5(%arg0: i32) -> (i32, i32) {
    %c0_i32 = arith.constant 0 : i32
    %c0_i32_0 = arith.constant 0 : i32
    return %arg0, %c0_i32 : i32, i32
  }
}

</mosaic_0001>

<llo_original>
// kernel: tpu_custom_call.1
$region0: #{tpu_custom_call.1}
  #allocation0 [shape = 'u32[]', space=smem, size = 0x4, offset = 0x4, fixed_abs, tag = 'smem constant byte address 0x4 - core index']
  #allocation1 [shape = 'u32[144,128]{1,0:T(1,128)}', space=vmem, size = 0x12000, scoped, tag = 'internal scratch']
  %s0 = inlined_call_operand.hbm [shape: f32[16,8,16], index: 0, kind: input, shape index: {}]
  %s1 = inlined_call_operand.hbm [shape: f32[16,32], index: 1, kind: input, shape index: {}]
  %s2 = inlined_call_operand.vmem [shape: f32[1,32], index: 2, kind: input, shape index: {}]
  %s3 = inlined_call_operand.vmem [shape: f32[1,32], index: 3, kind: input, shape index: {}]
  %s4 = inlined_call_operand.hbm [shape: f32[16,16], index: 4, kind: output, shape index: {0}]
  %s5 = inlined_call_operand.vmem [shape: f32[16,8], index: 5, kind: output, shape index: {1}]
  %6 = xla_tuple %s4, %s5
  %s7 = sld [smem:[#allocation0]]
  $region65: #{tpu_custom_call.1} parent=0
    _
  %s9 = ssub.s32 1, %s7
  %s10 = scalar_select 0, %s9, %s7
  $region1: #{tpu_custom_call.1} parent=0
    #allocation2 [shape = 'u8[65536]{0}', space=vmem, size = 0x10000, scoped, tag = 'input window, operand 0']
    #allocation3 [shape = 's32[2]{0}', space=sflag, size = 0x8, scoped, tag = 'scoped memory for tpu_custom_call.1']
    #allocation4 [shape = 's32[2]{0}', space=sflag, size = 0x8, scoped, tag = 'scoped memory for tpu_custom_call.1']
    #allocation5 [shape = 'u8[8192]{0}', space=vmem, size = 0x2000, scoped, tag = 'input window, operand 1, single buffered']
    #allocation6 [shape = 's32[1]{0}', space=sflag, size = 0x4, scoped, tag = 'scoped memory for tpu_custom_call.1']
    #allocation7 [shape = 'u8[8192]{0}', space=vmem, size = 0x2000, scoped, tag = 'output window, operand 0']
    %11 = vsyncpa [#allocation3], 0
    %s12 = scalar_lea.sflag [#allocation3], 1
    %13 = vsyncpa %s12, 0
    %14 = vsyncpa [#allocation6], 0
    %15 = vsyncpa [#allocation4], 0
    %s16 = scalar_lea.sflag [#allocation4], 1
    %17 = vsyncpa %s16, 0
    loop: start=0, step=1, limit=4
    $region2: #{tpu_custom_call.1} parent=1 // loop_pre_header
      _
    $region3: #{tpu_custom_call.1} parent=1 // loop_header
      %s19 = sphi 0, %s23
      %p20 = scmp.ge.s32.totalorder %s19, 4
      %s29 = sphi 0, %s31
      %s32 = sphi 0, %s29
      %s33 = sphi 0, %s32
      %s49 = sphi 0, %s33
      %s53 = sphi 0, %s53
      %s55 = sphi 0, %s53
      %s56 = sphi 0, %s55
      %s70 = sphi 0, %s56
      %s74 = sphi 0, %s74
      %s76 = sphi 0, %s74
      %s77 = sphi 0, %s76
      %s91 = sphi 0, %s77
      %s95 = sphi 0, %s95
      %s97 = sphi 0, %s95
      %s98 = sphi 0, %s97
      %s112 = sphi 0, %s98
      %s118 = sphi 0, %s120
      %s121 = sphi 0, %s118
      %s122 = sphi 0, %s121
      %s138 = sphi 0, %s122
      %s144 = sphi 0, %s146
      %s147 = sphi 0, %s144
      %s148 = sphi 0, %s147
      %s164 = sphi 0, %s148
    $region4: #{tpu_custom_call.1} parent=1 // loop_header_branch
      %22 = sbr.rel (%p20) target = $region8
    $region5: #{tpu_custom_call.1} parent=1 // loop_body
      %s24 = ssub.s32 %s19, 1
      %s25 = ssub.s32 %s19, 2
      %s26 = sadd.s32 %s19, 1
      %s27 = ssub.s32 %s19, %s26
      %p28 = scmp.eq.s32.totalorder %s27, 0
      %s30 = sadd.s32 %s29, 1
      %s31 = scalar_select %p28, %s29, %s30
      %p34 = pneg %p28
      %p35 = scmp.eq.s32.totalorder %s19, 1
      %p36 = por %p34, %p35
      %p37 = scmp.ne.s32.totalorder %s29, %s32
      %p38 = scmp.eq.s32.totalorder %s19, 0
      %p39 = por %p37, %p38
      %p40 = scmp.ne.s32.totalorder %s29, %s32
      %p41 = scmp.eq.s32.totalorder %s24, 1
      %p42 = por %p40, %p41
      %p43 = scmp.ne.s32.totalorder %s32, %s33
      %p44 = scmp.eq.s32.totalorder %s24, 0
      %p45 = por %p43, %p44
      %p46 = scmp.ne.s32.totalorder %s32, %s33
      %p47 = scmp.eq.s32.totalorder %s25, 1
      %p48 = por %p46, %p47
      %p50 = scmp.ne.s32.totalorder %s33, %s49
      %p51 = scmp.eq.s32.totalorder %s25, 0
      %p52 = por %p50, %p51
      %s54 = sadd.s32 %s53, 1
      %p57 = scmp.eq.s32.totalorder %s19, 1
      %p58 = scmp.ne.s32.totalorder %s53, %s55
      %p59 = scmp.eq.s32.totalorder %s19, 0
      %p60 = por %p58, %p59
      %p61 = scmp.ne.s32.totalorder %s53, %s55
      %p62 = scmp.eq.s32.totalorder %s24, 1
      %p63 = por %p61, %p62
      %p64 = scmp.ne.s32.totalorder %s55, %s56
      %p65 = scmp.eq.s32.totalorder %s24, 0
      %p66 = por %p64, %p65
      %p67 = scmp.ne.s32.totalorder %s55, %s56
      %p68 = scmp.eq.s32.totalorder %s25, 1
      %p69 = por %p67, %p68
      %p71 = scmp.ne.s32.totalorder %s56, %s70
      %p72 = scmp.eq.s32.totalorder %s25, 0
      %p73 = por %p71, %p72
      %s75 = sadd.s32 %s74, 1
      %p78 = scmp.eq.s32.totalorder %s19, 1
      %p79 = scmp.ne.s32.totalorder %s74, %s76
      %p80 = scmp.eq.s32.totalorder %s19, 0
      %p81 = por %p79, %p80
      %p82 = scmp.ne.s32.totalorder %s74, %s76
      %p83 = scmp.eq.s32.totalorder %s24, 1
      %p84 = por %p82, %p83
      %p85 = scmp.ne.s32.totalorder %s76, %s77
      %p86 = scmp.eq.s32.totalorder %s24, 0
      %p87 = por %p85, %p86
      %p88 = scmp.ne.s32.totalorder %s76, %s77
      %p89 = scmp.eq.s32.totalorder %s25, 1
      %p90 = por %p88, %p89
      %p92 = scmp.ne.s32.totalorder %s77, %s91
      %p93 = scmp.eq.s32.totalorder %s25, 0
      %p94 = por %p92, %p93
      %s96 = sadd.s32 %s95, 1
      %p99 = scmp.eq.s32.totalorder %s19, 1
      %p100 = scmp.ne.s32.totalorder %s95, %s97
      %p101 = scmp.eq.s32.totalorder %s19, 0
      %p102 = por %p100, %p101
      %p103 = scmp.ne.s32.totalorder %s95, %s97
      %p104 = scmp.eq.s32.totalorder %s24, 1
      %p105 = por %p103, %p104
      %p106 = scmp.ne.s32.totalorder %s97, %s98
      %p107 = scmp.eq.s32.totalorder %s24, 0
      %p108 = por %p106, %p107
      %p109 = scmp.ne.s32.totalorder %s97, %s98
      %p110 = scmp.eq.s32.totalorder %s25, 1
      %p111 = por %p109, %p110
      %p113 = scmp.ne.s32.totalorder %s98, %s112
      %p114 = scmp.eq.s32.totalorder %s25, 0
      %p115 = por %p113, %p114
      %s116 = ssub.s32 %s19, %s26
      %p117 = scmp.eq.s32.totalorder %s116, 0
      %s119 = sadd.s32 %s118, 1
      %s120 = scalar_select %p117, %s118, %s119
      %p123 = pneg %p117
      %p124 = scmp.eq.s32.totalorder %s19, 1
      %p125 = por %p123, %p124
      %p126 = scmp.ne.s32.totalorder %s118, %s121
      %p127 = scmp.eq.s32.totalorder %s19, 0
      %p128 = por %p126, %p127
      %p129 = scmp.ne.s32.totalorder %s118, %s121
      %p130 = scmp.eq.s32.totalorder %s24, 1
      %p131 = por %p129, %p130
      %p132 = scmp.ne.s32.totalorder %s121, %s122
      %p133 = scmp.eq.s32.totalorder %s24, 0
      %p134 = por %p132, %p133
      %p135 = scmp.ne.s32.totalorder %s121, %s122
      %p136 = scmp.eq.s32.totalorder %s25, 1
      %p137 = por %p135, %p136
      %p139 = scmp.ne.s32.totalorder %s122, %s138
      %p140 = scmp.eq.s32.totalorder %s25, 0
      %p141 = por %p139, %p140
      %s142 = ssub.s32 %s19, %s26
      %p143 = scmp.eq.s32.totalorder %s142, 0
      %s145 = sadd.s32 %s144, 1
      %s146 = scalar_select %p143, %s144, %s145
      %p149 = pneg %p143
      %p150 = scmp.eq.s32.totalorder %s19, 1
      %p151 = por %p149, %p150
      %p152 = scmp.ne.s32.totalorder %s144, %s147
      %p153 = scmp.eq.s32.totalorder %s19, 0
      %p154 = por %p152, %p153
      %p155 = scmp.ne.s32.totalorder %s144, %s147
      %p156 = scmp.eq.s32.totalorder %s24, 1
      %p157 = por %p155, %p156
      %p158 = scmp.ne.s32.totalorder %s147, %s148
      %p159 = scmp.eq.s32.totalorder %s24, 0
      %p160 = por %p158, %p159
      %p161 = scmp.ne.s32.totalorder %s147, %s148
      %p162 = scmp.eq.s32.totalorder %s25, 1
      %p163 = por %p161, %p162
      %p165 = scmp.ne.s32.totalorder %s148, %s164
      %p166 = scmp.eq.s32.totalorder %s25, 0
      %p167 = por %p165, %p166
      %p168 = scmp.le.s32.totalorder 1, %s19
      %p169 = scmp.lt.s32.totalorder %s19, 3
      %p170 = pnand %p168, %p169
      %p171 = pneg %p170
      // Predicated region
      $region9: #{tpu_custom_call.1} parent=5 // pred_check
        _
      $region10: #{tpu_custom_call.1} parent=5 // pred_check_branch
        %173 = sbr.rel (%p170) target = $region12
      $region11: #{tpu_custom_call.1} parent=5 // pred_region
        %s174 = ssub.s32 %s19, 1
        // Predicated region
        $region13: #{tpu_custom_call.1} parent=11 // pred_check
          %p175 = pneg %p66
        $region14: #{tpu_custom_call.1} parent=11 // pred_check_branch
          %177 = sbr.rel (%p175) target = $region16
        $region15: #{tpu_custom_call.1} parent=11 // pred_region
          %s179 = ssub.s32 256, 256
          %180 = vsyncadd [#allocation6], %s179
          %s181 = sshll.u32 [#allocation5], 4
          %s182 = int_to_ptr.vmem [resolvable:$true] %s181
          %187 = dma.hbm_to_vmem [thread:$0]  %s1, 256, %s182, [#allocation6], 128, 128, 8
        $region16: #{tpu_custom_call.1} parent=11 // pred_fallthru
          _
        // Predicated region
        $region17: #{tpu_custom_call.1} parent=11 // pred_check
          %p188 = pneg %p87
        $region18: #{tpu_custom_call.1} parent=11 // pred_check_branch
          %190 = sbr.rel (%p188) target = $region20
        $region19: #{tpu_custom_call.1} parent=11 // pred_region
          _
        $region20: #{tpu_custom_call.1} parent=11 // pred_fallthru
          _
        // Predicated region
        $region21: #{tpu_custom_call.1} parent=11 // pred_check
          %p191 = pneg %p108
        $region22: #{tpu_custom_call.1} parent=11 // pred_check_branch
          %193 = sbr.rel (%p191) target = $region24
        $region23: #{tpu_custom_call.1} parent=11 // pred_region
          _
        $region24: #{tpu_custom_call.1} parent=11 // pred_fallthru
          _
      $region12: #{tpu_custom_call.1} parent=5 // pred_fallthru
        _
      %p194 = scmp.lt.s32.totalorder %s19, 2
      // Predicated region
      $region25: #{tpu_custom_call.1} parent=5 // pred_check
        %p195 = pneg %p194
      $region26: #{tpu_custom_call.1} parent=5 // pred_check_branch
        %197 = sbr.rel (%p195) target = $region28
      $region27: #{tpu_custom_call.1} parent=5 // pred_region
        // Predicated region
        $region29: #{tpu_custom_call.1} parent=27 // pred_check
          %p198 = pneg %p39
        $region30: #{tpu_custom_call.1} parent=27 // pred_check_branch
          %200 = sbr.rel (%p198) target = $region32
        $region31: #{tpu_custom_call.1} parent=27 // pred_region
          %s201 = sand.u32 %s29, 1
          %s202 = scalar_lea.sflag [#allocation3], %s201
          %s203 = sand.u32 %s29, 1
          %s204 = smul.addr %s203, 64
          %s205 = scalar_lea.vmem [#allocation2], %s204
          %s206 = smul.u32 8, %s19
          %s208 = ssub.s32 1024, 1024
          %209 = vsyncadd %s202, %s208
          %s210 = smul.addr %s206, 128
          %s211 = scalar_lea.hbm %s0, %s210
          %s212 = sshll.u32 %s205, 4
          %s213 = int_to_ptr.vmem [resolvable:$true] %s212
          %218 = dma.hbm_to_vmem [thread:$0]  %s211, 1024, %s213, %s202, 128, 128, 8
        $region32: #{tpu_custom_call.1} parent=27 // pred_fallthru
          _
      $region28: #{tpu_custom_call.1} parent=5 // pred_fallthru
        _
      %p219 = scmp.le.s32.totalorder 1, %s19
      %p220 = scmp.lt.s32.totalorder %s19, 3
      %p221 = pnand %p219, %p220
      %p222 = pneg %p221
      // Predicated region
      $region33: #{tpu_custom_call.1} parent=5 // pred_check
        _
      $region34: #{tpu_custom_call.1} parent=5 // pred_check_branch
        %224 = sbr.rel (%p221) target = $region36
      $region35: #{tpu_custom_call.1} parent=5 // pred_region
        %s225 = ssub.s32 %s19, 1
        %s226 = sand.u32 %s32, 1
        %s227 = scalar_lea.sflag [#allocation3], %s226
        %s228 = sand.u32 %s32, 1
        %s229 = smul.addr %s228, 64
        %s230 = scalar_lea.vmem [#allocation2], %s229
        // Predicated region
        $region37: #{tpu_custom_call.1} parent=35 // pred_check
          %p231 = pneg %p45
        $region38: #{tpu_custom_call.1} parent=35 // pred_check_branch
          %233 = sbr.rel (%p231) target = $region40
        $region39: #{tpu_custom_call.1} parent=35 // pred_region
          %234 = dma.done %s227, 1024
        $region40: #{tpu_custom_call.1} parent=35 // pred_fallthru
          _
        // Predicated region
        $region41: #{tpu_custom_call.1} parent=35 // pred_check
          %p235 = pneg %p66
        $region42: #{tpu_custom_call.1} parent=35 // pred_check_branch
          %237 = sbr.rel (%p235) target = $region44
        $region43: #{tpu_custom_call.1} parent=35 // pred_region
          %238 = dma.done [#allocation6], 256
        $region44: #{tpu_custom_call.1} parent=35 // pred_fallthru
          _
        %s239 = sand.u32 %s32, 1
        %s240 = scalar_lea.sflag [#allocation3], %s239
        %s241 = sand.u32 %s32, 1
        %s242 = smul.addr %s241, 64
        %s243 = scalar_lea.vmem [#allocation2], %s242
        %p244 = pneg %p45
        %p245 = pneg %p42
        %p246 = pneg %p66
        %p247 = pneg %p63
        %p248 = pneg %p87
        %p249 = pneg %p84
        %p250 = pneg %p108
        %p251 = pneg %p105
        %p252 = pneg %p134
        %p253 = pneg %p131
        %s254 = sand.u32 %s121, 1
        %s255 = scalar_lea.sflag [#allocation4], %s254
        %s256 = sand.u32 %s121, 1
        %s257 = smul.addr %s256, 8
        %s258 = scalar_lea.vmem [#allocation7], %s257
        %p259 = pneg %p160
        %p260 = pneg %p157
        %p261 = scmp.lt.s32.totalorder %s24, 1
        %s262 = scalar_select %p261, %s24, 1
        %s263 = smul.addr %s262, 8
        %s264 = scalar_lea.vmem %s5, %s263
        %s265 = smul.u32 8, %s24
        %p266 = scmp.lt.s32.totalorder %s24, 1
        %s267 = scalar_select %p266, %s24, 1
        %s268 = smul.addr %s267, 8
        %s269 = scalar_lea.vmem %s5, %s268
        %v270 = vld [vmem:[%s230] sm:$0xff]
        %v271 = vld [vmem:[%s230 + $0x8] sm:$0xff]
        %v272 = vld [vmem:[%s230 + $0x10] sm:$0xff]
        %v273 = vld [vmem:[%s230 + $0x18] sm:$0xff]
        %v274 = vld [vmem:[%s230 + $0x20] sm:$0xff]
        %v275 = vld [vmem:[%s230 + $0x28] sm:$0xff]
        %v276 = vld [vmem:[%s230 + $0x30] sm:$0xff]
        %v277 = vld [vmem:[%s230 + $0x38] sm:$0xff]
        %v278 = vld [vmem:[#allocation5] sm:$0xff]
        %v279 = vld [vmem:[#allocation5 + $0x8] sm:$0xff]
        %v280 = vld [vmem:[%s2] sm:$0x1]
        %v282 = vlaneseq
        %v283 = vshrl.u32 %v282, 7
        %v284 = vsub.s32 0, %v283
        %v285 = vrot.slane %v280, %v284
        %vm287 = vcmask 130048
        %v289 = vsel %vm287, %v270, 0
        %v292 = vsel %vm287, %v271, 0
        %v295 = vsel %vm287, %v272, 0
        %v298 = vsel %vm287, %v273, 0
        %v301 = vsel %vm287, %v274, 0
        %v304 = vsel %vm287, %v275, 0
        %v307 = vsel %vm287, %v276, 0
        %v310 = vsel %vm287, %v277, 0
        %312 = vmatprep.subr.mxu0 0.0
        %313 = vmatpush1.msra.mxu0 %v278
        %314 = vmatprep.subr.mxu0 0.0
        %315 = vmatpush1.msra.mxu0 %v279
        %316 = vmatprep.subr.mxu0 0.0
        %317 = vmatpush1.msra.mxu0 0.0
        %318 = vmatprep.subr.mxu0 0.0
        %319 = vmatpush1.msra.mxu0 0.0
        %320 = vmatprep.subr.mxu0 0.0
        %321 = vmatpush1.msra.mxu0 0.0
        %322 = vmatprep.subr.mxu0 0.0
        %323 = vmatpush1.msra.mxu0 0.0
        %324 = vmatprep.subr.mxu0 0.0
        %325 = vmatpush1.msra.mxu0 0.0
        %326 = vmatprep.subr.mxu0 0.0
        %327 = vmatpush1.msra.mxu0 0.0
        %328 = vmatprep.subr.mxu0 0.0
        %329 = vmatpush1.msra.mxu0 0.0
        %330 = vmatprep.subr.mxu0 0.0
        %331 = vmatpush1.msra.mxu0 0.0
        %332 = vmatprep.subr.mxu0 0.0
        %333 = vmatpush1.msra.mxu0 0.0
        %334 = vmatprep.subr.mxu0 0.0
        %335 = vmatpush1.msra.mxu0 0.0
        %336 = vmatprep.subr.mxu0 0.0
        %337 = vmatpush1.msra.mxu0 0.0
        %338 = vmatprep.subr.mxu0 0.0
        %339 = vmatpush1.msra.mxu0 0.0
        %340 = vmatprep.subr.mxu0 0.0
        %341 = vmatpush1.msra.mxu0 0.0
        %342 = vmatprep.subr.mxu0 0.0
        %343 = vmatpush1.msra.mxu0 0.0
        %344 = vmatprep.subr.mxu0 0.0
        %345 = vmatpush1.msra.mxu0 0.0
        %346 = vmatprep.subr.mxu0 0.0
        %347 = vmatpush1.msra.mxu0 0.0
        %348 = vmatprep.subr.mxu0 0.0
        %349 = vmatpush1.msra.mxu0 0.0
        %350 = vmatprep.subr.mxu0 0.0
        %351 = vmatpush1.msra.mxu0 0.0
        %352 = vmatprep.subr.mxu0 0.0
        %353 = vmatpush1.msra.mxu0 0.0
        %354 = vmatprep.subr.mxu0 0.0
        %355 = vmatpush1.msra.mxu0 0.0
        %356 = vmatprep.subr.mxu0 0.0
        %357 = vmatpush1.msra.mxu0 0.0
        %358 = vmatprep.subr.mxu0 0.0
        %359 = vmatpush1.msra.mxu0 0.0
        %360 = vmatprep.subr.mxu0 0.0
        %361 = vmatpush1.msra.mxu0 0.0
        %362 = vmatprep.subr.mxu0 0.0
        %363 = vmatpush1.msra.mxu0 0.0
        %364 = vmatprep.subr.mxu0 0.0
        %365 = vmatpush1.msra.mxu0 0.0
        %366 = vmatprep.subr.mxu0 0.0
        %367 = vmatpush1.msra.mxu0 0.0
        %368 = vmatprep.subr.mxu0 0.0
        %369 = vmatpush1.msra.mxu0 0.0
        %370 = vmatprep.subr.mxu0 0.0
        %371 = vmatpush1.msra.mxu0 0.0
        %372 = vmatprep.subr.mxu0 0.0
        %373 = vmatpush1.msra.mxu0 0.0
        %374 = vmatprep.subr.mxu0 0.0
        %375 = vmatpush1.msra.mxu0 0.0
        %376 = vmatprep.mubr.f32.mxu0 0.0
        %377 = vmatmul.mubr.f32.gmra.mrb[0].mxu0 %v289
        %v378 = vpop.f32.mrb[0].mxu0
        %v379 = vadd.f32 %v285, %v378
        %v380 = vpop.f32.mrb[0].mxu0
        %381 = vmatprep.mubr.f32.mxu0 0.0
        %382 = vmatmul.mubr.f32.gmra.mrb[0].mxu0 %v292
        %v383 = vpop.f32.mrb[0].mxu0
        %v384 = vadd.f32 %v285, %v383
        %v385 = vpop.f32.mrb[0].mxu0
        %386 = vmatprep.mubr.f32.mxu0 0.0
        %387 = vmatmul.mubr.f32.gmra.mrb[0].mxu0 %v295
        %v388 = vpop.f32.mrb[0].mxu0
        %v389 = vadd.f32 %v285, %v388
        %v390 = vpop.f32.mrb[0].mxu0
        %391 = vmatprep.mubr.f32.mxu0 0.0
        %392 = vmatmul.mubr.f32.gmra.mrb[0].mxu0 %v298
        %v393 = vpop.f32.mrb[0].mxu0
        %v394 = vadd.f32 %v285, %v393
        %v395 = vpop.f32.mrb[0].mxu0
        %396 = vmatprep.mubr.f32.mxu0 0.0
        %397 = vmatmul.mubr.f32.gmra.mrb[0].mxu0 %v301
        %v398 = vpop.f32.mrb[0].mxu0
        %v399 = vadd.f32 %v285, %v398
        %v400 = vpop.f32.mrb[0].mxu0
        %401 = vmatprep.mubr.f32.mxu0 0.0
        %402 = vmatmul.mubr.f32.gmra.mrb[0].mxu0 %v304
        %v403 = vpop.f32.mrb[0].mxu0
        %v404 = vadd.f32 %v285, %v403
        %v405 = vpop.f32.mrb[0].mxu0
        %406 = vmatprep.mubr.f32.mxu0 0.0
        %407 = vmatmul.mubr.f32.gmra.mrb[0].mxu0 %v307
        %v408 = vpop.f32.mrb[0].mxu0
        %v409 = vadd.f32 %v285, %v408
        %v410 = vpop.f32.mrb[0].mxu0
        %411 = vmatprep.mubr.f32.mxu0 0.0
        %412 = vmatmul.mubr.f32.gmra.mrb[0].mxu0 %v310
        %v413 = vpop.f32.mrb[0].mxu0
        %v414 = vadd.f32 %v285, %v413
        %v415 = vpop.f32.mrb[0].mxu0
        %416 = vdwg.mxu0
        %v417 = vtanh.pop %v379
        %v418 = vtanh.pop %v384
        %v419 = vtanh.pop %v389
        %v420 = vtanh.pop %v394
        %v421 = vtanh.pop %v399
        %v422 = vtanh.pop %v404
        %v423 = vtanh.pop %v409
        %v424 = vtanh.pop %v414
        %v425 = vld [vmem:[%s3] sm:$0x1]
        %v427 = vlaneseq
        %v428 = vshrl.u32 %v427, 7
        %v429 = vsub.s32 0, %v428
        %v430 = vrot.slane %v425, %v429
        %v432 = vmul.f32 %v417, %v430
        %v433 = vmul.f32 %v418, %v430
        %v434 = vmul.f32 %v419, %v430
        %v435 = vmul.f32 %v420, %v430
        %v436 = vmul.f32 %v421, %v430
        %v437 = vmul.f32 %v422, %v430
        %v438 = vmul.f32 %v423, %v430
        %v439 = vmul.f32 %v424, %v430
        %vm440 = vcmask 261120
        %v441 = vsel %vm440, %v432, 0.0
        %442 = vadd.xlane.f32.xlu0 %v441
        %v443 = vpop.xlane.xlu0 %442
        %v444 = vsel %vm440, %v433, 0.0
        %445 = vadd.xlane.f32.xlu0 %v444
        %v446 = vpop.xlane.xlu0 %445
        %v447 = vsel %vm440, %v434, 0.0
        %448 = vadd.xlane.f32.xlu0 %v447
        %v449 = vpop.xlane.xlu0 %448
        %v450 = vsel %vm440, %v435, 0.0
        %451 = vadd.xlane.f32.xlu0 %v450
        %v452 = vpop.xlane.xlu0 %451
        %v453 = vsel %vm440, %v436, 0.0
        %454 = vadd.xlane.f32.xlu0 %v453
        %v455 = vpop.xlane.xlu0 %454
        %v456 = vsel %vm440, %v437, 0.0
        %457 = vadd.xlane.f32.xlu0 %v456
        %v458 = vpop.xlane.xlu0 %457
        %v459 = vsel %vm440, %v438, 0.0
        %460 = vadd.xlane.f32.xlu0 %v459
        %v461 = vpop.xlane.xlu0 %460
        %v462 = vsel %vm440, %v439, 0.0
        %463 = vadd.xlane.f32.xlu0 %v462
        %v464 = vpop.xlane.xlu0 %463
        %v473 = vlaneseq
        %v474 = vand.u32 %v473, 127
        %v475 = vlaneseq
        %v476 = vshrl.u32 %v475, 7
        %v477 = vsub.s32 %v474, %v476
        %v478 = vrot.slane %v443, %v477
        %v479 = vlaneseq
        %v480 = vshrl.u32 %v479, 7
        %v481 = vsub.s32 %v474, %v480
        %v482 = vrot.slane %v446, %v481
        %v483 = vlaneseq
        %v484 = vshrl.u32 %v483, 7
        %v485 = vsub.s32 %v474, %v484
        %v486 = vrot.slane %v449, %v485
        %v487 = vlaneseq
        %v488 = vshrl.u32 %v487, 7
        %v489 = vsub.s32 %v474, %v488
        %v490 = vrot.slane %v452, %v489
        %v491 = vlaneseq
        %v492 = vshrl.u32 %v491, 7
        %v493 = vsub.s32 %v474, %v492
        %v494 = vrot.slane %v455, %v493
        %v495 = vlaneseq
        %v496 = vshrl.u32 %v495, 7
        %v497 = vsub.s32 %v474, %v496
        %v498 = vrot.slane %v458, %v497
        %v499 = vlaneseq
        %v500 = vshrl.u32 %v499, 7
        %v501 = vsub.s32 %v474, %v500
        %v502 = vrot.slane %v461, %v501
        %v503 = vlaneseq
        %v504 = vshrl.u32 %v503, 7
        %v505 = vsub.s32 %v474, %v504
        %v506 = vrot.slane %v464, %v505
        %vm507 = vcmask 1041409
        %v508 = vsel %vm507, %v482, %v478
        %vm509 = vcmask 1042434
        %v510 = vsel %vm509, %v486, %v508
        %vm511 = vcmask 1043459
        %v512 = vsel %vm511, %v490, %v510
        %vm513 = vcmask 1044484
        %v514 = vsel %vm513, %v494, %v512
        %vm515 = vcmask 1045509
        %v516 = vsel %vm515, %v498, %v514
        %vm517 = vcmask 1046534
        %v518 = vsel %vm517, %v502, %v516
        %vm519 = vcmask 1047559
        %v520 = vsel %vm519, %v506, %v518
        %vm522 = vcmask 64512
        %v523 = vsel %vm522, %v520, -inf
        %524 = vmax.xlane.f32.xlu0 %v523
        %v525 = vpop.xlane.xlu0 %524
        %v527 = vlaneseq
        %v528 = vshrl.u32 %v527, 7
        %v529 = vsub.s32 0, %v528
        %v530 = vrot.slane %v525, %v529
        %v531 = vlaneseq
        %v532 = vshrl.u32 %v531, 7
        %v533 = vsub.s32 1, %v532
        %v534 = vrot.slane %v525, %v533
        %v535 = vlaneseq
        %v536 = vshrl.u32 %v535, 7
        %v537 = vsub.s32 2, %v536
        %v538 = vrot.slane %v525, %v537
        %v539 = vlaneseq
        %v540 = vshrl.u32 %v539, 7
        %v541 = vsub.s32 3, %v540
        %v542 = vrot.slane %v525, %v541
        %v543 = vlaneseq
        %v544 = vshrl.u32 %v543, 7
        %v545 = vsub.s32 4, %v544
        %v546 = vrot.slane %v525, %v545
        %v547 = vlaneseq
        %v548 = vshrl.u32 %v547, 7
        %v549 = vsub.s32 5, %v548
        %v550 = vrot.slane %v525, %v549
        %v551 = vlaneseq
        %v552 = vshrl.u32 %v551, 7
        %v553 = vsub.s32 6, %v552
        %v554 = vrot.slane %v525, %v553
        %v555 = vlaneseq
        %v556 = vshrl.u32 %v555, 7
        %v557 = vsub.s32 7, %v556
        %v558 = vrot.slane %v525, %v557
        %v567 = vsub.f32 %v443, %v530
        %v568 = vsub.f32 %v446, %v534
        %v569 = vsub.f32 %v449, %v538
        %v570 = vsub.f32 %v452, %v542
        %v571 = vsub.f32 %v455, %v546
        %v572 = vsub.f32 %v458, %v550
        %v573 = vsub.f32 %v461, %v554
        %v574 = vsub.f32 %v464, %v558
        %v575 = vmul.f32 %v567, 1.442695
        %v576 = vpow.pop %v575
        %v577 = vmul.f32 %v568, 1.442695
        %v578 = vpow.pop %v577
        %v579 = vmul.f32 %v569, 1.442695
        %v580 = vpow.pop %v579
        %v581 = vmul.f32 %v570, 1.442695
        %v582 = vpow.pop %v581
        %v583 = vmul.f32 %v571, 1.442695
        %v584 = vpow.pop %v583
        %v585 = vmul.f32 %v572, 1.442695
        %v586 = vpow.pop %v585
        %v587 = vmul.f32 %v573, 1.442695
        %v588 = vpow.pop %v587
        %v589 = vmul.f32 %v574, 1.442695
        %v590 = vpow.pop %v589
        %599 = vset.pattern.permute.xlu0 0
        %600 = vperm.xlu0 %599, %v576
        %v601 = vpop.permute.xlu0 %600
        %602 = vset.pattern.permute.xlu0 0
        %603 = vperm.xlu0 %602, %v578
        %v604 = vpop.permute.xlu0 %603
        %605 = vset.pattern.permute.xlu0 0
        %606 = vperm.xlu0 %605, %v580
        %v607 = vpop.permute.xlu0 %606
        %608 = vset.pattern.permute.xlu0 0
        %609 = vperm.xlu0 %608, %v582
        %v610 = vpop.permute.xlu0 %609
        %611 = vset.pattern.permute.xlu0 0
        %612 = vperm.xlu0 %611, %v584
        %v613 = vpop.permute.xlu0 %612
        %614 = vset.pattern.permute.xlu0 0
        %615 = vperm.xlu0 %614, %v586
        %v616 = vpop.permute.xlu0 %615
        %617 = vset.pattern.permute.xlu0 0
        %618 = vperm.xlu0 %617, %v588
        %v619 = vpop.permute.xlu0 %618
        %620 = vset.pattern.permute.xlu0 0
        %621 = vperm.xlu0 %620, %v590
        %v622 = vpop.permute.xlu0 %621
        %v623 = vlaneseq
        %v624 = vshrl.u32 %v623, 7
        %v625 = vsub.s32 %v474, %v624
        %v626 = vrot.slane %v601, %v625
        %v627 = vlaneseq
        %v628 = vshrl.u32 %v627, 7
        %v629 = vsub.s32 %v474, %v628
        %v630 = vrot.slane %v604, %v629
        %v631 = vlaneseq
        %v632 = vshrl.u32 %v631, 7
        %v633 = vsub.s32 %v474, %v632
        %v634 = vrot.slane %v607, %v633
        %v635 = vlaneseq
        %v636 = vshrl.u32 %v635, 7
        %v637 = vsub.s32 %v474, %v636
        %v638 = vrot.slane %v610, %v637
        %v639 = vlaneseq
        %v640 = vshrl.u32 %v639, 7
        %v641 = vsub.s32 %v474, %v640
        %v642 = vrot.slane %v613, %v641
        %v643 = vlaneseq
        %v644 = vshrl.u32 %v643, 7
        %v645 = vsub.s32 %v474, %v644
        %v646 = vrot.slane %v616, %v645
        %v647 = vlaneseq
        %v648 = vshrl.u32 %v647, 7
        %v649 = vsub.s32 %v474, %v648
        %v650 = vrot.slane %v619, %v649
        %v651 = vlaneseq
        %v652 = vshrl.u32 %v651, 7
        %v653 = vsub.s32 %v474, %v652
        %v654 = vrot.slane %v622, %v653
        %v655 = vsel %vm507, %v630, %v626
        %v656 = vsel %vm509, %v634, %v655
        %v657 = vsel %vm511, %v638, %v656
        %v658 = vsel %vm513, %v642, %v657
        %v659 = vsel %vm515, %v646, %v658
        %v660 = vsel %vm517, %v650, %v659
        %v661 = vsel %vm519, %v654, %v660
        %v663 = vsel %vm522, %v661, 0.0
        %664 = vadd.xlane.f32.xlu0 %v663
        %v665 = vpop.xlane.xlu0 %664
        %v667 = vlaneseq
        %v668 = vshrl.u32 %v667, 7
        %v669 = vsub.s32 0, %v668
        %v670 = vrot.slane %v665, %v669
        %v671 = vlaneseq
        %v672 = vshrl.u32 %v671, 7
        %v673 = vsub.s32 1, %v672
        %v674 = vrot.slane %v665, %v673
        %v675 = vlaneseq
        %v676 = vshrl.u32 %v675, 7
        %v677 = vsub.s32 2, %v676
        %v678 = vrot.slane %v665, %v677
        %v679 = vlaneseq
        %v680 = vshrl.u32 %v679, 7
        %v681 = vsub.s32 3, %v680
        %v682 = vrot.slane %v665, %v681
        %v683 = vlaneseq
        %v684 = vshrl.u32 %v683, 7
        %v685 = vsub.s32 4, %v684
        %v686 = vrot.slane %v665, %v685
        %v687 = vlaneseq
        %v688 = vshrl.u32 %v687, 7
        %v689 = vsub.s32 5, %v688
        %v690 = vrot.slane %v665, %v689
        %v691 = vlaneseq
        %v692 = vshrl.u32 %v691, 7
        %v693 = vsub.s32 6, %v692
        %v694 = vrot.slane %v665, %v693
        %v695 = vlaneseq
        %v696 = vshrl.u32 %v695, 7
        %v697 = vsub.s32 7, %v696
        %v698 = vrot.slane %v665, %v697
        %v707 = vrcp.pop %v670
        %v708 = vmul.f32 %v576, %v707
        %v709 = vrcp.pop %v674
        %v710 = vmul.f32 %v578, %v709
        %v711 = vrcp.pop %v678
        %v712 = vmul.f32 %v580, %v711
        %v713 = vrcp.pop %v682
        %v714 = vmul.f32 %v582, %v713
        %v715 = vrcp.pop %v686
        %v716 = vmul.f32 %v584, %v715
        %v717 = vrcp.pop %v690
        %v718 = vmul.f32 %v586, %v717
        %v719 = vrcp.pop %v694
        %v720 = vmul.f32 %v588, %v719
        %v721 = vrcp.pop %v698
        %v722 = vmul.f32 %v590, %v721
        %731 = vset.pattern.permute.xlu0 0
        %732 = vperm.xlu0 %731, %v708
        %v733 = vpop.permute.xlu0 %732
        %734 = vset.pattern.permute.xlu0 0
        %735 = vperm.xlu0 %734, %v710
        %v736 = vpop.permute.xlu0 %735
        %737 = vset.pattern.permute.xlu0 0
        %738 = vperm.xlu0 %737, %v712
        %v739 = vpop.permute.xlu0 %738
        %740 = vset.pattern.permute.xlu0 0
        %741 = vperm.xlu0 %740, %v714
        %v742 = vpop.permute.xlu0 %741
        %743 = vset.pattern.permute.xlu0 0
        %744 = vperm.xlu0 %743, %v716
        %v745 = vpop.permute.xlu0 %744
        %746 = vset.pattern.permute.xlu0 0
        %747 = vperm.xlu0 %746, %v718
        %v748 = vpop.permute.xlu0 %747
        %749 = vset.pattern.permute.xlu0 0
        %750 = vperm.xlu0 %749, %v720
        %v751 = vpop.permute.xlu0 %750
        %752 = vset.pattern.permute.xlu0 0
        %753 = vperm.xlu0 %752, %v722
        %v754 = vpop.permute.xlu0 %753
        %v755 = vlaneseq
        %v756 = vshrl.u32 %v755, 7
        %v757 = vsub.s32 %v474, %v756
        %v758 = vrot.slane %v733, %v757
        %v759 = vlaneseq
        %v760 = vshrl.u32 %v759, 7
        %v761 = vsub.s32 %v474, %v760
        %v762 = vrot.slane %v736, %v761
        %v763 = vlaneseq
        %v764 = vshrl.u32 %v763, 7
        %v765 = vsub.s32 %v474, %v764
        %v766 = vrot.slane %v739, %v765
        %v767 = vlaneseq
        %v768 = vshrl.u32 %v767, 7
        %v769 = vsub.s32 %v474, %v768
        %v770 = vrot.slane %v742, %v769
        %v771 = vlaneseq
        %v772 = vshrl.u32 %v771, 7
        %v773 = vsub.s32 %v474, %v772
        %v774 = vrot.slane %v745, %v773
        %v775 = vlaneseq
        %v776 = vshrl.u32 %v775, 7
        %v777 = vsub.s32 %v474, %v776
        %v778 = vrot.slane %v748, %v777
        %v779 = vlaneseq
        %v780 = vshrl.u32 %v779, 7
        %v781 = vsub.s32 %v474, %v780
        %v782 = vrot.slane %v751, %v781
        %v783 = vlaneseq
        %v784 = vshrl.u32 %v783, 7
        %v785 = vsub.s32 %v474, %v784
        %v786 = vrot.slane %v754, %v785
        %v787 = vsel %vm507, %v762, %v758
        %v788 = vsel %vm509, %v766, %v787
        %v789 = vsel %vm511, %v770, %v788
        %v790 = vsel %vm513, %v774, %v789
        %v791 = vsel %vm515, %v778, %v790
        %v792 = vsel %vm517, %v782, %v791
        %v793 = vsel %vm519, %v786, %v792
        %795 = vst.msk [vmem:[%s269] sm:$0xff] %vm522, %v793
        %v804 = vmul.f32 %v733, %v270
        %v805 = vmul.f32 %v736, %v271
        %v806 = vmul.f32 %v739, %v272
        %v807 = vmul.f32 %v742, %v273
        %v808 = vmul.f32 %v745, %v274
        %v809 = vmul.f32 %v748, %v275
        %v810 = vmul.f32 %v751, %v276
        %v811 = vmul.f32 %v754, %v277
        %v812 = vsel %vm287, %v804, 0.0
        %v813 = vrot.slane %v812, 4
        %v814 = vadd.f32 %v812, %v813
        %v815 = vrot.slane %v814, 2
        %v816 = vadd.f32 %v814, %v815
        %v817 = vrot.slane %v816, 1
        %v818 = vadd.f32 %v816, %v817
        %v819 = vsel %vm287, %v805, 0.0
        %v820 = vrot.slane %v819, 4
        %v821 = vadd.f32 %v819, %v820
        %v822 = vrot.slane %v821, 2
        %v823 = vadd.f32 %v821, %v822
        %v824 = vrot.slane %v823, 1
        %v825 = vadd.f32 %v823, %v824
        %v826 = vsel %vm287, %v806, 0.0
        %v827 = vrot.slane %v826, 4
        %v828 = vadd.f32 %v826, %v827
        %v829 = vrot.slane %v828, 2
        %v830 = vadd.f32 %v828, %v829
        %v831 = vrot.slane %v830, 1
        %v832 = vadd.f32 %v830, %v831
        %v833 = vsel %vm287, %v807, 0.0
        %v834 = vrot.slane %v833, 4
        %v835 = vadd.f32 %v833, %v834
        %v836 = vrot.slane %v835, 2
        %v837 = vadd.f32 %v835, %v836
        %v838 = vrot.slane %v837, 1
        %v839 = vadd.f32 %v837, %v838
        %v840 = vsel %vm287, %v808, 0.0
        %v841 = vrot.slane %v840, 4
        %v842 = vadd.f32 %v840, %v841
        %v843 = vrot.slane %v842, 2
        %v844 = vadd.f32 %v842, %v843
        %v845 = vrot.slane %v844, 1
        %v846 = vadd.f32 %v844, %v845
        %v847 = vsel %vm287, %v809, 0.0
        %v848 = vrot.slane %v847, 4
        %v849 = vadd.f32 %v847, %v848
        %v850 = vrot.slane %v849, 2
        %v851 = vadd.f32 %v849, %v850
        %v852 = vrot.slane %v851, 1
        %v853 = vadd.f32 %v851, %v852
        %v854 = vsel %vm287, %v810, 0.0
        %v855 = vrot.slane %v854, 4
        %v856 = vadd.f32 %v854, %v855
        %v857 = vrot.slane %v856, 2
        %v858 = vadd.f32 %v856, %v857
        %v859 = vrot.slane %v858, 1
        %v860 = vadd.f32 %v858, %v859
        %v861 = vsel %vm287, %v811, 0.0
        %v862 = vrot.slane %v861, 4
        %v863 = vadd.f32 %v861, %v862
        %v864 = vrot.slane %v863, 2
        %v865 = vadd.f32 %v863, %v864
        %v866 = vrot.slane %v865, 1
        %v867 = vadd.f32 %v865, %v866
        %v876 = vsel %vm507, %v825, %v818
        %v877 = vsel %vm509, %v832, %v876
        %v878 = vsel %vm511, %v839, %v877
        %v879 = vsel %vm513, %v846, %v878
        %v880 = vsel %vm515, %v853, %v879
        %v881 = vsel %vm517, %v860, %v880
        %v882 = vsel %vm519, %v867, %v881
        %884 = vst.msk [vmem:[%s258] sm:$0xff] %vm287, %v882
        %s885 = sand.u32 %s121, 1
        %s886 = scalar_lea.sflag [#allocation4], %s885
        %s887 = sand.u32 %s121, 1
        %s888 = smul.addr %s887, 8
        %s889 = scalar_lea.vmem [#allocation7], %s888
        %p890 = scmp.lt.s32.totalorder %s24, 1
        %s891 = scalar_select %p890, %s24, 1
        %s892 = smul.addr %s891, 8
        %s893 = scalar_lea.vmem %s5, %s892
        // Predicated region
        $region45: #{tpu_custom_call.1} parent=35 // pred_check
          %p894 = pneg %p131
        $region46: #{tpu_custom_call.1} parent=35 // pred_check_branch
          %896 = sbr.rel (%p894) target = $region48
        $region47: #{tpu_custom_call.1} parent=35 // pred_region
          %s898 = ssub.s32 128, 128
          %899 = vsyncadd %s886, %s898
          %s900 = smul.addr %s24, 128
          %s901 = scalar_lea.hbm %s4, %s900
          %s903 = sshll.u32 %s889, 4
          %s904 = int_to_ptr.vmem [resolvable:$true] %s903
          %906 = dma.vmem_to_hbm [thread:$0]  %s904, 128, %s901, %s886
        $region48: #{tpu_custom_call.1} parent=35 // pred_fallthru
          _
        // Predicated region
        $region49: #{tpu_custom_call.1} parent=35 // pred_check
          %p907 = pneg %p157
        $region50: #{tpu_custom_call.1} parent=35 // pred_check_branch
          %909 = sbr.rel (%p907) target = $region52
        $region51: #{tpu_custom_call.1} parent=35 // pred_region
          _
        $region52: #{tpu_custom_call.1} parent=35 // pred_fallthru
          _
      $region36: #{tpu_custom_call.1} parent=5 // pred_fallthru
        _
      %p910 = scmp.le.s32.totalorder 2, %s19
      // Predicated region
      $region53: #{tpu_custom_call.1} parent=5 // pred_check
        %p911 = pneg %p910
      $region54: #{tpu_custom_call.1} parent=5 // pred_check_branch
        %913 = sbr.rel (%p911) target = $region56
      $region55: #{tpu_custom_call.1} parent=5 // pred_region
        %s914 = ssub.s32 %s19, 2
        // Predicated region
        $region57: #{tpu_custom_call.1} parent=55 // pred_check
          %p915 = pneg %p137
        $region58: #{tpu_custom_call.1} parent=55 // pred_check_branch
          %917 = sbr.rel (%p915) target = $region60
        $region59: #{tpu_custom_call.1} parent=55 // pred_region
          %s918 = sand.u32 %s122, 1
          %s919 = scalar_lea.sflag [#allocation4], %s918
          %s920 = sand.u32 %s122, 1
          %s921 = smul.addr %s920, 8
          %s922 = scalar_lea.vmem [#allocation7], %s921
          %923 = dma.done %s919, 128
        $region60: #{tpu_custom_call.1} parent=55 // pred_fallthru
          _
        // Predicated region
        $region61: #{tpu_custom_call.1} parent=55 // pred_check
          %p924 = pneg %p163
        $region62: #{tpu_custom_call.1} parent=55 // pred_check_branch
          %926 = sbr.rel (%p924) target = $region64
        $region63: #{tpu_custom_call.1} parent=55 // pred_region
          %p927 = scmp.lt.s32.totalorder %s25, 1
          %s928 = scalar_select %p927, %s25, 1
          %s929 = smul.addr %s928, 8
          %s930 = scalar_lea.vmem %s5, %s929
        $region64: #{tpu_custom_call.1} parent=55 // pred_fallthru
          _
      $region56: #{tpu_custom_call.1} parent=5 // pred_fallthru
        _
    $region6: #{tpu_custom_call.1} parent=1 // loop_footer
      %s23 = sadd.s32 1, %s19
    $region7: #{tpu_custom_call.1} parent=1 // loop_footer_branch
      %18 = sbr.rel target = $region3
    $region8: #{tpu_custom_call.1} parent=1 // loop_exit
      _
    %931 = vsyncpa [#allocation3], 1
    %s932 = scalar_lea.sflag [#allocation3], 1
    %933 = vsyncpa %s932, 1
    %934 = vsyncpa [#allocation6], 1
    %935 = vsyncpa [#allocation4], 1
    %s936 = scalar_lea.sflag [#allocation4], 1
    %937 = vsyncpa %s936, 1

</llo_original>
